<compile_context>
chip_gen: v7x
topology: tpu7x:2x2x1
jax: 0.10.0
libtpu: 0.0.40
codegen_flags: <defaults>
</compile_context>

<pallas_src>
import jax
import jax.numpy as jnp
from jax.experimental import pallas as pl
from jax.experimental.pallas import tpu as pltpu


LANE = 128  # lane width: pad fused output dim to a multiple of this


def _round_up(x, m):
    return (x + m - 1) // m * m


def _ffpolicy_kernel(s_ref, w_ref, b_ref, o_ref):
    # Single fused matmul + bias for both heads.
    # s_ref: [tb, n_in], w_ref: [n_in, n_pad], b_ref: [1, n_pad], o_ref: [tb, n_pad]
    o_ref[...] = (
        jnp.dot(s_ref[...], w_ref[...], preferred_element_type=jnp.float32)
        + b_ref[...]
    )


def prepare_fused_params(w_pi_torch, b_pi, w_v_torch, b_v):
    """Fuse + pad params host-side (do once, reuse every step).

    w_pi_torch: [n_out, n_in] (torch Linear layout), b_pi: [n_out]
    w_v_torch:  [1, n_in],                           b_v:  [1]
    Returns (w_fused [n_in, n_pad], b_fused [1, n_pad]) zero-padded to a
    lane-dense last dim (multiple of 128).
    """
    n_out, n_in = w_pi_torch.shape
    w_fused = jnp.concatenate([w_pi_torch.T, w_v_torch.T], axis=1)  # [n_in, n_out+1]
    b_fused = jnp.concatenate([b_pi, b_v])[None, :]                 # [1, n_out+1]
    n_pad = _round_up(n_out + 1, LANE)
    pad = n_pad - (n_out + 1)
    w_fused = jnp.pad(w_fused, ((0, 0), (0, pad)))  # zero pad -> extra lanes are exact zeros
    b_fused = jnp.pad(b_fused, ((0, 0), (0, pad)))
    return w_fused.astype(jnp.float32), b_fused.astype(jnp.float32)


def ffpolicy_forward(state, w_fused, b_fused, n_out):
    """state: [B, n_in] f32. Returns (logits [B, n_out], value [B, 1])."""
    B, n_in = state.shape
    n_pad = w_fused.shape[1]

    # Batch tiling: tiles of up to 128 rows (8-aligned), grid over batch.
    tb = min(128, _round_up(B, 8))
    B_pad = _round_up(B, tb)
    if B_pad != B:
        state = jnp.pad(state, ((0, B_pad - B), (0, 0)))
    grid = (B_pad // tb,)

    out = pl.pallas_call(
        _ffpolicy_kernel,
        out_shape=jax.ShapeDtypeStruct((B_pad, n_pad), jnp.float32),
        grid=grid,
        in_specs=[
            # state: tiled over batch
            pl.BlockSpec((tb, n_in), lambda i: (i, 0)),
            # fused weight / bias: constant index_map -> stay VMEM-resident
            pl.BlockSpec((n_in, n_pad), lambda i: (0, 0)),
            pl.BlockSpec((1, n_pad), lambda i: (0, 0)),
        ],
        out_specs=pl.BlockSpec((tb, n_pad), lambda i: (i, 0)),
        compiler_params=pltpu.CompilerParams(
            dimension_semantics=("parallel",),
        ),
        cost_estimate=pl.CostEstimate(
            flops=2 * B_pad * n_in * n_pad,
            transcendentals=0,
            bytes_accessed=4 * (B_pad * n_in + n_in * n_pad + n_pad + B_pad * n_pad),
        ),
    )(state, w_fused, b_fused)

    logits = out[:B, :n_out]
    value = out[:B, n_out:n_out + 1]
    return logits, value


def _xavier_normal(key, fan_out, fan_in):
    # torch.nn.init.xavier_normal_: std = sqrt(2 / (fan_in + fan_out))
    std = jnp.sqrt(2.0 / (fan_in + fan_out))
    return std * jax.random.normal(key, (fan_out, fan_in), dtype=jnp.float32)


def _linear_bias_init(key, fan_in, fan_out):
    # PyTorch default Linear bias init: U(-1/sqrt(fan_in), 1/sqrt(fan_in))
    bound = 1.0 / jnp.sqrt(jnp.float32(fan_in))
    return jax.random.uniform(
        key, (fan_out,), dtype=jnp.float32, minval=-bound, maxval=bound
    )


if __name__ == "__main__":
    # Synthetic "env": observation dim 16, discrete action space with 4 actions.
    n_inputs = 16
    n_outputs = 4
    batch = 8

    key = jax.random.PRNGKey(0)
    k_state, k_wpi, k_bpi, k_wv, k_bv = jax.random.split(key, 5)

    # state.view(-1, n_inputs): build input already flattened to [B, n_inputs].
    state = jax.random.normal(k_state, (batch, n_inputs), dtype=jnp.float32)

    # Policy.fc1: weight [n_outputs, n_inputs] (xavier_normal), bias [n_outputs]
    w_pi_torch = _xavier_normal(k_wpi, n_outputs, n_inputs)
    b_pi = _linear_bias_init(k_bpi, n_inputs, n_outputs)
    # Value.fc1v: weight [1, n_inputs] (xavier_normal), bias [1]
    w_v_torch = _xavier_normal(k_wv, 1, n_inputs)
    b_v = _linear_bias_init(k_bv, n_inputs, 1)

    # Fuse + lane-pad params once (host-side).
    w_fused, b_fused = prepare_fused_params(w_pi_torch, b_pi, w_v_torch, b_v)

    logits, value = ffpolicy_forward(state, w_fused, b_fused, n_outputs)
    jax.block_until_ready((logits, value))

    # Reference check against plain JAX (same math as torch Linear).
    ref_logits = state @ w_pi_torch.T + b_pi
    ref_value = state @ w_v_torch.T + b_v
    assert logits.shape == (batch, n_outputs)
    assert value.shape == (batch, 1)
    assert jnp.allclose(logits, ref_logits, atol=1e-5, rtol=1e-5)
    assert jnp.allclose(value, ref_value, atol=1e-5, rtol=1e-5)

    # TODO(synk): act()'s Categorical/Normal sampling + log_prob/entropy lives
    # outside forward(); compose it in plain JAX around this kernel.

    print("KERNEL_OK")
</pallas_src>

<mosaic_0001>
module attributes {stable_mosaic.version = 11 : i64} {
  func.func @_ffpolicy_kernel(%arg0: i32, %arg1: memref<8x16xf32, #tpu.memory_space<vmem>>, %arg2: memref<16x128xf32, #tpu.memory_space<vmem>>, %arg3: memref<1x128xf32, #tpu.memory_space<vmem>>, %arg4: memref<8x128xf32, #tpu.memory_space<vmem>>) attributes {dimension_semantics = [#tpu.dimension_semantics<parallel>], iteration_bounds = array<i64: 1>, scalar_prefetch = 0 : i64, scratch_operands = 0 : i64, tpu.core_type = #tpu.core_type<tc>, window_params = [{transform_indices = @transform_0, window_bounds = array<i64: 8, 16>}, {pipeline_mode = #tpu.pipeline_mode<synchronous>, transform_indices = @transform_1, window_bounds = array<i64: 16, 128>}, {pipeline_mode = #tpu.pipeline_mode<synchronous>, transform_indices = @transform_2, window_bounds = array<i64: 1, 128>}, {transform_indices = @transform_3, window_bounds = array<i64: 8, 128>}]} {
    %c0 = arith.constant 0 : index
    %c0_0 = arith.constant 0 : index
    %0 = vector.load %arg1[%c0, %c0_0] : memref<8x16xf32, #tpu.memory_space<vmem>>, vector<8x16xf32>
    %c0_1 = arith.constant 0 : index
    %c0_2 = arith.constant 0 : index
    %1 = vector.load %arg2[%c0_1, %c0_2] : memref<16x128xf32, #tpu.memory_space<vmem>>, vector<16x128xf32>
    %cst = arith.constant dense<0.000000e+00> : vector<8x128xf32>
    %2 = tpu.matmul %0, %1, %cst {dimension_numbers = #tpu.dot_dimension_numbers<[1], [0], [0], [1], [0, 0, 1, 1], [], []>} : vector<8x16xf32>, vector<16x128xf32>, vector<8x128xf32> -> vector<8x128xf32>
    %c0_3 = arith.constant 0 : index
    %c0_4 = arith.constant 0 : index
    %3 = vector.load %arg3[%c0_3, %c0_4] : memref<1x128xf32, #tpu.memory_space<vmem>>, vector<1x128xf32>
    %4 = vector.broadcast %3 : vector<1x128xf32> to vector<8x128xf32>
    %5 = arith.addf %2, %4 : vector<8x128xf32>
    %c0_5 = arith.constant 0 : index
    %c0_6 = arith.constant 0 : index
    %6 = vector.load %arg4[%c0_5, %c0_6] : memref<8x128xf32, #tpu.memory_space<vmem>>, vector<8x128xf32>
    tpu.vector_store %arg4[%c0_5, %c0_6], %5 {strides = array<i32>} : memref<8x128xf32, #tpu.memory_space<vmem>>, vector<8x128xf32>,
    return
  }
  func.func @transform_0(%arg0: i32) -> (i32, i32) {
    %c0_i32 = arith.constant 0 : i32
    %c0_i32_0 = arith.constant 0 : i32
    return %arg0, %c0_i32 : i32, i32
  }
  func.func @transform_1(%arg0: i32) -> (i32, i32) {
    %c0_i32 = arith.constant 0 : i32
    %c0_i32_0 = arith.constant 0 : i32
    %c0_i32_1 = arith.constant 0 : i32
    return %c0_i32, %c0_i32_0 : i32, i32
  }
  func.func @transform_2(%arg0: i32) -> (i32, i32) {
    %c0_i32 = arith.constant 0 : i32
    %c0_i32_0 = arith.constant 0 : i32
    %c0_i32_1 = arith.constant 0 : i32
    return %c0_i32, %c0_i32_0 : i32, i32
  }
  func.func @transform_3(%arg0: i32) -> (i32, i32) {
    %c0_i32 = arith.constant 0 : i32
    %c0_i32_0 = arith.constant 0 : i32
    return %arg0, %c0_i32 : i32, i32
  }
}

</mosaic_0001>

<llo_original>
// kernel: tpu_custom_call.1
$region0: #{tpu_custom_call.1}
  #allocation0 [shape = 'u32[]', space=smem, size = 0x4, offset = 0x4, fixed_abs, tag = 'smem constant byte address 0x4 - core index']
  #allocation1 [shape = 'u32[144,128]{1,0:T(1,128)}', space=vmem, size = 0x12000, scoped, tag = 'internal scratch']
  %s0 = inlined_call_operand.hbm [shape: f32[8,16], index: 0, kind: input, shape index: {}]
  %s1 = inlined_call_operand.hbm [shape: f32[16,128], index: 1, kind: input, shape index: {}]
  %s2 = inlined_call_operand.vmem [shape: f32[1,128], index: 2, kind: input, shape index: {}]
  %s3 = inlined_call_operand.hbm [shape: f32[8,128], index: 3, kind: output, shape index: {}]
  %s4 = sld [smem:[#allocation0]]
  $region30: #{tpu_custom_call.1} parent=0
    _
  %s6 = ssub.s32 1, %s4
  %s7 = scalar_select 0, %s6, %s4
  $region1: #{tpu_custom_call.1} parent=0
    #allocation2 [shape = 'u8[4096]{0}', space=vmem, size = 0x1000, scoped, tag = 'input window, operand 0, single buffered']
    #allocation3 [shape = 's32[1]{0}', space=sflag, size = 0x4, scoped, tag = 'scoped memory for tpu_custom_call.1']
    #allocation4 [shape = 's32[1]{0}', space=sflag, size = 0x4, scoped, tag = 'scoped memory for tpu_custom_call.1']
    #allocation5 [shape = 'u8[8192]{0}', space=vmem, size = 0x2000, scoped, tag = 'input window, operand 1, single buffered']
    #allocation6 [shape = 's32[1]{0}', space=sflag, size = 0x4, scoped, tag = 'scoped memory for tpu_custom_call.1']
    #allocation7 [shape = 'u8[4096]{0}', space=vmem, size = 0x1000, scoped, tag = 'output window, operand 0, single buffered']
    %8 = vsyncpa [#allocation3], 0
    %9 = vsyncpa [#allocation6], 0
    %10 = vsyncpa [#allocation4], 0
    // Predicated region
    $region2: #{tpu_custom_call.1} parent=1 // pred_check
      _
    $region3: #{tpu_custom_call.1} parent=1 // pred_check_branch
      %12 = sbr.rel (0) target = $region5
    $region4: #{tpu_custom_call.1} parent=1 // pred_region
      %s14 = ssub.s32 128, 128
      %15 = vsyncadd [#allocation3], %s14
      %s17 = sshll.u32 [#allocation2], 4
      %s18 = int_to_ptr.vmem [resolvable:$true] %s17
      %20 = dma.hbm_to_vmem [thread:$0]  %s0, 128, %s18, [#allocation3]
    $region5: #{tpu_custom_call.1} parent=1 // pred_fallthru
      _
    // Predicated region
    $region6: #{tpu_custom_call.1} parent=1 // pred_check
      _
    $region7: #{tpu_custom_call.1} parent=1 // pred_check_branch
      %22 = sbr.rel (0) target = $region9
    $region8: #{tpu_custom_call.1} parent=1 // pred_region
      %s24 = ssub.s32 256, 256
      %25 = vsyncadd [#allocation6], %s24
      %s26 = sshll.u32 [#allocation5], 4
      %s27 = int_to_ptr.vmem [resolvable:$true] %s26
      %32 = dma.hbm_to_vmem [thread:$0]  %s1, 256, %s27, [#allocation6], 128, 128, 8
    $region9: #{tpu_custom_call.1} parent=1 // pred_fallthru
      _
    // Predicated region
    $region10: #{tpu_custom_call.1} parent=1 // pred_check
      _
    $region11: #{tpu_custom_call.1} parent=1 // pred_check_branch
      %34 = sbr.rel (0) target = $region13
    $region12: #{tpu_custom_call.1} parent=1 // pred_region
      _
    $region13: #{tpu_custom_call.1} parent=1 // pred_fallthru
      _
    // Predicated region
    $region14: #{tpu_custom_call.1} parent=1 // pred_check
      _
    $region15: #{tpu_custom_call.1} parent=1 // pred_check_branch
      %36 = sbr.rel (0) target = $region17
    $region16: #{tpu_custom_call.1} parent=1 // pred_region
      %37 = dma.done [#allocation3], 128
    $region17: #{tpu_custom_call.1} parent=1 // pred_fallthru
      _
    // Predicated region
    $region18: #{tpu_custom_call.1} parent=1 // pred_check
      _
    $region19: #{tpu_custom_call.1} parent=1 // pred_check_branch
      %39 = sbr.rel (0) target = $region21
    $region20: #{tpu_custom_call.1} parent=1 // pred_region
      %40 = dma.done [#allocation6], 256
    $region21: #{tpu_custom_call.1} parent=1 // pred_fallthru
      _
    %v41 = vld [vmem:[#allocation2] sm:$0xff]
    %v42 = vld [vmem:[#allocation5] sm:$0xff]
    %v43 = vld [vmem:[#allocation5 + $0x8] sm:$0xff]
    %v44 = vld [vmem:[%s2] sm:$0x1]
    %v46 = vlaneseq
    %v47 = vshrl.u32 %v46, 7
    %v48 = vsub.s32 0, %v47
    %v49 = vrot.slane %v44, %v48
    %vm51 = vcmask 130048
    %v53 = vsel %vm51, %v41, 0
    %55 = vmatprep.subr.mxu0 0.0
    %56 = vmatpush1.msra.mxu0 %v42
    %57 = vmatprep.subr.mxu0 0.0
    %58 = vmatpush1.msra.mxu0 %v43
    %59 = vmatprep.subr.mxu0 0.0
    %60 = vmatpush1.msra.mxu0 0.0
    %61 = vmatprep.subr.mxu0 0.0
    %62 = vmatpush1.msra.mxu0 0.0
    %63 = vmatprep.subr.mxu0 0.0
    %64 = vmatpush1.msra.mxu0 0.0
    %65 = vmatprep.subr.mxu0 0.0
    %66 = vmatpush1.msra.mxu0 0.0
    %67 = vmatprep.subr.mxu0 0.0
    %68 = vmatpush1.msra.mxu0 0.0
    %69 = vmatprep.subr.mxu0 0.0
    %70 = vmatpush1.msra.mxu0 0.0
    %71 = vmatprep.subr.mxu0 0.0
    %72 = vmatpush1.msra.mxu0 0.0
    %73 = vmatprep.subr.mxu0 0.0
    %74 = vmatpush1.msra.mxu0 0.0
    %75 = vmatprep.subr.mxu0 0.0
    %76 = vmatpush1.msra.mxu0 0.0
    %77 = vmatprep.subr.mxu0 0.0
    %78 = vmatpush1.msra.mxu0 0.0
    %79 = vmatprep.subr.mxu0 0.0
    %80 = vmatpush1.msra.mxu0 0.0
    %81 = vmatprep.subr.mxu0 0.0
    %82 = vmatpush1.msra.mxu0 0.0
    %83 = vmatprep.subr.mxu0 0.0
    %84 = vmatpush1.msra.mxu0 0.0
    %85 = vmatprep.subr.mxu0 0.0
    %86 = vmatpush1.msra.mxu0 0.0
    %87 = vmatprep.subr.mxu0 0.0
    %88 = vmatpush1.msra.mxu0 0.0
    %89 = vmatprep.subr.mxu0 0.0
    %90 = vmatpush1.msra.mxu0 0.0
    %91 = vmatprep.subr.mxu0 0.0
    %92 = vmatpush1.msra.mxu0 0.0
    %93 = vmatprep.subr.mxu0 0.0
    %94 = vmatpush1.msra.mxu0 0.0
    %95 = vmatprep.subr.mxu0 0.0
    %96 = vmatpush1.msra.mxu0 0.0
    %97 = vmatprep.subr.mxu0 0.0
    %98 = vmatpush1.msra.mxu0 0.0
    %99 = vmatprep.subr.mxu0 0.0
    %100 = vmatpush1.msra.mxu0 0.0
    %101 = vmatprep.subr.mxu0 0.0
    %102 = vmatpush1.msra.mxu0 0.0
    %103 = vmatprep.subr.mxu0 0.0
    %104 = vmatpush1.msra.mxu0 0.0
    %105 = vmatprep.subr.mxu0 0.0
    %106 = vmatpush1.msra.mxu0 0.0
    %107 = vmatprep.subr.mxu0 0.0
    %108 = vmatpush1.msra.mxu0 0.0
    %109 = vmatprep.subr.mxu0 0.0
    %110 = vmatpush1.msra.mxu0 0.0
    %111 = vmatprep.subr.mxu0 0.0
    %112 = vmatpush1.msra.mxu0 0.0
    %113 = vmatprep.subr.mxu0 0.0
    %114 = vmatpush1.msra.mxu0 0.0
    %115 = vmatprep.subr.mxu0 0.0
    %116 = vmatpush1.msra.mxu0 0.0
    %117 = vmatprep.subr.mxu0 0.0
    %118 = vmatpush1.msra.mxu0 0.0
    %119 = vmatprep.mubr.f32.mxu0 0.0
    %120 = vmatmul.mubr.f32.gmra.mrb[0].mxu0 %v53
    %v121 = vpop.f32.mrb[0].mxu0
    %v122 = vadd.f32 %v49, %v121
    %v123 = vpop.f32.mrb[0].mxu0
    %124 = vdwg.mxu0
    %125 = vst [vmem:[#allocation7] sm:$0xff] %v122
    // Predicated region
    $region22: #{tpu_custom_call.1} parent=1 // pred_check
      _
    $region23: #{tpu_custom_call.1} parent=1 // pred_check_branch
      %127 = sbr.rel (0) target = $region25
    $region24: #{tpu_custom_call.1} parent=1 // pred_region
      %s129 = ssub.s32 128, 128
      %130 = vsyncadd [#allocation4], %s129
      %s132 = sshll.u32 [#allocation7], 4
      %s133 = int_to_ptr.vmem [resolvable:$true] %s132
      %135 = dma.vmem_to_hbm [thread:$0]  %s133, 128, %s3, [#allocation4]
    $region25: #{tpu_custom_call.1} parent=1 // pred_fallthru
      _
    // Predicated region
    $region26: #{tpu_custom_call.1} parent=1 // pred_check
      _
    $region27: #{tpu_custom_call.1} parent=1 // pred_check_branch
      %137 = sbr.rel (0) target = $region29
    $region28: #{tpu_custom_call.1} parent=1 // pred_region
      %138 = dma.done [#allocation4], 128
    $region29: #{tpu_custom_call.1} parent=1 // pred_fallthru
      _
    %139 = vsyncpa [#allocation3], 1
    %140 = vsyncpa [#allocation6], 1
    %141 = vsyncpa [#allocation4], 1

</llo_original>
